<compile_context>
chip_gen: v7x
topology: tpu7x:2x2x1
jax: 0.10.0
libtpu: 0.0.40
codegen_flags: <defaults>
</compile_context>

<pallas_src>
import jax
import jax.numpy as jnp
from jax.experimental import pallas as pl
from jax.experimental.pallas import tpu as pltpu

# ----------------------------- configuration --------------------------------
N_CONTROL   = 3                        # args.n_control (non-shared agents)
PROXY_Z_DIM = 8                        # args.proxy_z_dim
OBS_DIM     = 24                       # input_shape - proxy_z_dim
INPUT_SHAPE = OBS_DIM + PROXY_Z_DIM    # input_shape passed to the module
HIDDEN      = 32                       # args.hidden_dim
N_ACTIONS   = 8                        # args.n_actions
BATCH       = 2                        # flattened batch per controlled agent

NC_OBS = N_CONTROL * OBS_DIM           # 72
NC_Z   = N_CONTROL * PROXY_Z_DIM       # 24
NCH    = N_CONTROL * HIDDEN            # 96
NCA    = N_CONTROL * N_ACTIONS         # 24

PAD      = 128                         # lane-dense width for all layers
BIAS_ROW = NCH                         # 96: constant-1 lane / bias row
ROW_TILE = 512                         # batch rows per grid step (multiple of 8)


def _round_up(n, m):
    return ((n + m - 1) // m) * m


# ------------------------------ Pallas kernel --------------------------------
def _mlp_ns_kernel(x_ref, w_ref, q_ref):
    """x_ref: (tile, 128) input slab (obs | z | 1 | 0-pad),
    w_ref: (3, 128, 128) augmented block-diagonal weights (biases in row 96),
    q_ref: (tile, 128) output slab (packed q in lanes 0:24)."""
    x = x_ref[...]
    h1 = jnp.maximum(
        jnp.dot(x, w_ref[0], preferred_element_type=jnp.float32), 0.0)
    h2 = jnp.maximum(
        jnp.dot(h1, w_ref[1], preferred_element_type=jnp.float32), 0.0)
    q = jnp.dot(h2, w_ref[2], preferred_element_type=jnp.float32)
    q_ref[...] = q.astype(q_ref.dtype)


def _run_kernel(x, w_packed):
    """x: (b_pad, 128), w_packed: (3, 128, 128)  ->  (b_pad, 128)."""
    bp = x.shape[0]
    tile = min(ROW_TILE, bp)
    assert bp % tile == 0 and tile % 8 == 0
    grid = (bp // tile,)

    flops = 2 * bp * PAD * PAD * 3
    itemsize = 4
    bytes_accessed = itemsize * (x.size + w_packed.size + bp * PAD)

    return pl.pallas_call(
        _mlp_ns_kernel,
        out_shape=jax.ShapeDtypeStruct((bp, PAD), x.dtype),
        grid=grid,
        in_specs=[
            pl.BlockSpec((tile, PAD), lambda i: (i, 0)),
            # Weights: same block every step -> single HBM->VMEM DMA, resident.
            pl.BlockSpec((3, PAD, PAD), lambda i: (0, 0, 0)),
        ],
        out_specs=pl.BlockSpec((tile, PAD), lambda i: (i, 0)),
        compiler_params=pltpu.CompilerParams(
            dimension_semantics=("parallel",),       # shard batch across TCs on v7x
            vmem_limit_bytes=32 * 1024 * 1024,
        ),
        cost_estimate=pl.CostEstimate(
            flops=flops, transcendentals=0, bytes_accessed=bytes_accessed),
    )(x, w_packed)


# ------------------------------ parameters ------------------------------------
def init_params(key):
    """Per-agent (non-shared) parameter stacks, as the PyTorch module holds them."""
    ks = jax.random.split(key, 6)
    scale = 0.1
    return {
        "w1": scale * jax.random.normal(ks[0], (N_CONTROL, INPUT_SHAPE, HIDDEN), jnp.float32),
        "b1": scale * jax.random.normal(ks[1], (N_CONTROL, HIDDEN), jnp.float32),
        "w2": scale * jax.random.normal(ks[2], (N_CONTROL, HIDDEN, HIDDEN), jnp.float32),
        "b2": scale * jax.random.normal(ks[3], (N_CONTROL, HIDDEN), jnp.float32),
        "w3": scale * jax.random.normal(ks[4], (N_CONTROL, HIDDEN, N_ACTIONS), jnp.float32),
        "b3": scale * jax.random.normal(ks[5], (N_CONTROL, N_ACTIONS), jnp.float32),
    }


def pack_params(p):
    """One-time repack into a single (3, 128, 128) augmented block-diagonal slab.

    Layer 0 rows: obs blocks [0:72), z blocks [72:96), bias row 96.
    Layer 1 rows: hidden blocks [0:96),                 bias row 96.
    Layer 2 rows: hidden blocks [0:96),                 bias row 96 (cols 0:24).
    W1[96,96] = W2[96,96] = 1.0 propagate the constant-1 lane through the ReLUs.
    """
    w = jnp.zeros((3, PAD, PAD), jnp.float32)
    for i in range(N_CONTROL):
        ho = slice(i * HIDDEN, (i + 1) * HIDDEN)
        ao = slice(i * N_ACTIONS, (i + 1) * N_ACTIONS)
        # layer 1: obs part + proxy_z part + bias
        w = w.at[0, i * OBS_DIM:(i + 1) * OBS_DIM, ho].set(p["w1"][i, :OBS_DIM, :])
        w = w.at[0, NC_OBS + i * PROXY_Z_DIM: NC_OBS + (i + 1) * PROXY_Z_DIM, ho].set(
            p["w1"][i, OBS_DIM:, :])
        w = w.at[0, BIAS_ROW, ho].set(p["b1"][i])
        # layer 2
        w = w.at[1, ho, ho].set(p["w2"][i])
        w = w.at[1, BIAS_ROW, ho].set(p["b2"][i])
        # layer 3
        w = w.at[2, ho, ao].set(p["w3"][i])
        w = w.at[2, BIAS_ROW, ao].set(p["b3"][i])
    # keep the constant-1 lane alive through layers 1 and 2 (1.0 survives ReLU)
    w = w.at[0, BIAS_ROW, BIAS_ROW].set(1.0)
    w = w.at[1, BIAS_ROW, BIAS_ROW].set(1.0)
    return w


# ------------------------------ module forward --------------------------------
def mlp_gen_ns_forward(w_packed, inputs, proxy_z):
    """Mirrors MLPGenNSAgent.forward.

    Branch 1 (inputs.shape[0] == n_control) is exactly the B == 1 case of
    branch 2: agent i consumes row i and writes output row i.
    """
    assert inputs.shape[:-1] == proxy_z.shape[:-1]
    n_rows = inputs.shape[0]
    assert n_rows % N_CONTROL == 0
    b = n_rows // N_CONTROL

    obs_flat = inputs.reshape(b, NC_OBS)        # free row-major reshape
    z_flat = proxy_z.reshape(b, NC_Z)           # free row-major reshape

    b_pad = _round_up(max(b, 8), 8)
    if b_pad > ROW_TILE:
        b_pad = _round_up(b_pad, ROW_TILE)

    # One lane-dense (b_pad, 128) input slab: [obs | z | 1.0 | zeros].
    x = jnp.zeros((b_pad, PAD), jnp.float32)
    x = x.at[:b, :NC_OBS].set(obs_flat)
    x = x.at[:b, NC_OBS:NC_OBS + NC_Z].set(z_flat)
    x = x.at[:, BIAS_ROW].set(1.0)

    q_pad = _run_kernel(x, w_packed)            # (b_pad, 128)
    # lanes 0:24 = [q_agent0 | q_agent1 | q_agent2]; reshape reproduces
    # torch's th.cat(qs, dim=-1).view(-1, n_actions) row order (batch*nc + agent).
    return q_pad[:b, :NCA].reshape(n_rows, N_ACTIONS)


# pure-JAX reference (per-agent, un-packed params) for a correctness check
def _reference(params, inputs, proxy_z):
    def one_agent(i, x):
        h1 = jnp.maximum(x @ params["w1"][i] + params["b1"][i], 0.0)
        h2 = jnp.maximum(h1 @ params["w2"][i] + params["b2"][i], 0.0)
        return h2 @ params["w3"][i] + params["b3"][i]

    if inputs.shape[0] == N_CONTROL:
        x_full = jnp.concatenate([inputs, proxy_z], axis=-1)
        qs = [one_agent(i, x_full[i:i + 1]) for i in range(N_CONTROL)]
        return jnp.concatenate(qs, axis=0)
    else:
        obs = inputs.reshape(-1, N_CONTROL, OBS_DIM)
        z = proxy_z.reshape(-1, N_CONTROL, PROXY_Z_DIM)
        x_full = jnp.concatenate([obs, z], axis=-1)
        qs = [one_agent(i, x_full[:, i])[:, None, :] for i in range(N_CONTROL)]
        return jnp.concatenate(qs, axis=-1).reshape(-1, N_ACTIONS)


# ---------------------------------- main --------------------------------------
if __name__ == "__main__":
    key = jax.random.PRNGKey(0)
    k_par, k_in, k_z, k_in1, k_z1 = jax.random.split(key, 5)

    params = init_params(k_par)
    w_packed = pack_params(params)        # one-time repack (not per forward)

    # Branch 2 inputs: (BATCH * N_CONTROL, feature)
    inputs = jax.random.normal(k_in, (BATCH * N_CONTROL, OBS_DIM), jnp.float32)
    proxy_z = jax.random.normal(k_z, (BATCH * N_CONTROL, PROXY_Z_DIM), jnp.float32)
    q2 = mlp_gen_ns_forward(w_packed, inputs, proxy_z)
    q2 = jax.block_until_ready(q2)
    assert q2.shape == (BATCH * N_CONTROL, N_ACTIONS)

    # Branch 1 inputs: (N_CONTROL, feature)
    inputs1 = jax.random.normal(k_in1, (N_CONTROL, OBS_DIM), jnp.float32)
    proxy_z1 = jax.random.normal(k_z1, (N_CONTROL, PROXY_Z_DIM), jnp.float32)
    q1 = mlp_gen_ns_forward(w_packed, inputs1, proxy_z1)
    q1 = jax.block_until_ready(q1)
    assert q1.shape == (N_CONTROL, N_ACTIONS)

    # correctness vs pure-JAX (un-packed) reference
    ref2 = _reference(params, inputs, proxy_z)
    ref1 = _reference(params, inputs1, proxy_z1)
    assert jnp.allclose(q2, ref2, atol=1e-4, rtol=1e-4)
    assert jnp.allclose(q1, ref1, atol=1e-4, rtol=1e-4)

    print("KERNEL_OK")
</pallas_src>

<mosaic_0001>
module attributes {stable_mosaic.version = 11 : i64} {
  func.func @_mlp_ns_kernel(%arg0: i32, %arg1: memref<8x128xf32, #tpu.memory_space<vmem>>, %arg2: memref<3x128x128xf32, #tpu.memory_space<vmem>>, %arg3: memref<8x128xf32, #tpu.memory_space<vmem>>) attributes {dimension_semantics = [#tpu.dimension_semantics<parallel>], iteration_bounds = array<i64: 1>, scalar_prefetch = 0 : i64, scratch_operands = 0 : i64, tpu.core_type = #tpu.core_type<tc>, window_params = [{transform_indices = @transform_0, window_bounds = array<i64: 8, 128>}, {pipeline_mode = #tpu.pipeline_mode<synchronous>, transform_indices = @transform_1, window_bounds = array<i64: 3, 128, 128>}, {transform_indices = @transform_2, window_bounds = array<i64: 8, 128>}]} {
    %c0 = arith.constant 0 : index
    %c0_0 = arith.constant 0 : index
    %0 = vector.load %arg1[%c0, %c0_0] : memref<8x128xf32, #tpu.memory_space<vmem>>, vector<8x128xf32>
    %c0_1 = arith.constant 0 : index
    %c0_2 = arith.constant 0 : index
    %c0_3 = arith.constant 0 : index
    %1 = vector.load %arg2[%c0_1, %c0_2, %c0_3] : memref<3x128x128xf32, #tpu.memory_space<vmem>>, vector<1x128x128xf32>
    %2 = vector.shape_cast %1 : vector<1x128x128xf32> to vector<128x128xf32>
    %cst = arith.constant dense<0.000000e+00> : vector<8x128xf32>
    %3 = tpu.matmul %0, %2, %cst {dimension_numbers = #tpu.dot_dimension_numbers<[1], [0], [0], [1], [0, 0, 1, 1], [], []>} : vector<8x128xf32>, vector<128x128xf32>, vector<8x128xf32> -> vector<8x128xf32>
    %cst_4 = arith.constant 0.000000e+00 : f32
    %4 = vector.broadcast %cst_4 : f32 to vector<8x128xf32>
    %5 = arith.maximumf %3, %4 : vector<8x128xf32>
    %c1 = arith.constant 1 : index
    %c0_5 = arith.constant 0 : index
    %c0_6 = arith.constant 0 : index
    %6 = vector.load %arg2[%c1, %c0_5, %c0_6] : memref<3x128x128xf32, #tpu.memory_space<vmem>>, vector<1x128x128xf32>
    %7 = vector.shape_cast %6 : vector<1x128x128xf32> to vector<128x128xf32>
    %cst_7 = arith.constant dense<0.000000e+00> : vector<8x128xf32>
    %8 = tpu.matmul %5, %7, %cst_7 {dimension_numbers = #tpu.dot_dimension_numbers<[1], [0], [0], [1], [0, 0, 1, 1], [], []>} : vector<8x128xf32>, vector<128x128xf32>, vector<8x128xf32> -> vector<8x128xf32>
    %cst_8 = arith.constant 0.000000e+00 : f32
    %9 = vector.broadcast %cst_8 : f32 to vector<8x128xf32>
    %10 = arith.maximumf %8, %9 : vector<8x128xf32>
    %c2 = arith.constant 2 : index
    %c0_9 = arith.constant 0 : index
    %c0_10 = arith.constant 0 : index
    %11 = vector.load %arg2[%c2, %c0_9, %c0_10] : memref<3x128x128xf32, #tpu.memory_space<vmem>>, vector<1x128x128xf32>
    %12 = vector.shape_cast %11 : vector<1x128x128xf32> to vector<128x128xf32>
    %cst_11 = arith.constant dense<0.000000e+00> : vector<8x128xf32>
    %13 = tpu.matmul %10, %12, %cst_11 {dimension_numbers = #tpu.dot_dimension_numbers<[1], [0], [0], [1], [0, 0, 1, 1], [], []>} : vector<8x128xf32>, vector<128x128xf32>, vector<8x128xf32> -> vector<8x128xf32>
    %c0_12 = arith.constant 0 : index
    %c0_13 = arith.constant 0 : index
    %14 = vector.load %arg3[%c0_12, %c0_13] : memref<8x128xf32, #tpu.memory_space<vmem>>, vector<8x128xf32>
    tpu.vector_store %arg3[%c0_12, %c0_13], %13 {strides = array<i32>} : memref<8x128xf32, #tpu.memory_space<vmem>>, vector<8x128xf32>,
    return
  }
  func.func @transform_0(%arg0: i32) -> (i32, i32) {
    %c0_i32 = arith.constant 0 : i32
    %c0_i32_0 = arith.constant 0 : i32
    return %arg0, %c0_i32 : i32, i32
  }
  func.func @transform_1(%arg0: i32) -> (i32, i32, i32) {
    %c0_i32 = arith.constant 0 : i32
    %c0_i32_0 = arith.constant 0 : i32
    %c0_i32_1 = arith.constant 0 : i32
    %c0_i32_2 = arith.constant 0 : i32
    return %c0_i32, %c0_i32_0, %c0_i32_1 : i32, i32, i32
  }
  func.func @transform_2(%arg0: i32) -> (i32, i32) {
    %c0_i32 = arith.constant 0 : i32
    %c0_i32_0 = arith.constant 0 : i32
    return %arg0, %c0_i32 : i32, i32
  }
}

</mosaic_0001>

<llo_original>
// kernel: tpu_custom_call.1
$region0: #{tpu_custom_call.1}
  #allocation0 [shape = 'u32[]', space=smem, size = 0x4, offset = 0x4, fixed_abs, tag = 'smem constant byte address 0x4 - core index']
  #allocation1 [shape = 'u32[144,128]{1,0:T(1,128)}', space=vmem, size = 0x12000, scoped, tag = 'internal scratch']
  %s0 = inlined_call_operand.hbm [shape: f32[8,128], index: 0, kind: input, shape index: {}]
  %s1 = inlined_call_operand.hbm [shape: f32[3,128,128], index: 1, kind: input, shape index: {}]
  %s2 = inlined_call_operand.hbm [shape: f32[8,128], index: 2, kind: output, shape index: {}]
  %s3 = sld [smem:[#allocation0]]
  $region26: #{tpu_custom_call.1} parent=0
    _
  %s5 = ssub.s32 1, %s3
  %s6 = scalar_select 0, %s5, %s3
  $region1: #{tpu_custom_call.1} parent=0
    #allocation2 [shape = 'u8[4096]{0}', space=vmem, size = 0x1000, scoped, tag = 'input window, operand 0, single buffered']
    #allocation3 [shape = 's32[1]{0}', space=sflag, size = 0x4, scoped, tag = 'scoped memory for tpu_custom_call.1']
    #allocation4 [shape = 's32[1]{0}', space=sflag, size = 0x4, scoped, tag = 'scoped memory for tpu_custom_call.1']
    #allocation5 [shape = 'u8[196608]{0}', space=vmem, size = 0x30000, scoped, tag = 'input window, operand 1, single buffered']
    #allocation6 [shape = 's32[1]{0}', space=sflag, size = 0x4, scoped, tag = 'scoped memory for tpu_custom_call.1']
    #allocation7 [shape = 'u8[4096]{0}', space=vmem, size = 0x1000, scoped, tag = 'output window, operand 0, single buffered']
    %7 = vsyncpa [#allocation3], 0
    %8 = vsyncpa [#allocation6], 0
    %9 = vsyncpa [#allocation4], 0
    // Predicated region
    $region2: #{tpu_custom_call.1} parent=1 // pred_check
      _
    $region3: #{tpu_custom_call.1} parent=1 // pred_check_branch
      %11 = sbr.rel (0) target = $region5
    $region4: #{tpu_custom_call.1} parent=1 // pred_region
      %s13 = ssub.s32 128, 128
      %14 = vsyncadd [#allocation3], %s13
      %s16 = sshll.u32 [#allocation2], 4
      %s17 = int_to_ptr.vmem [resolvable:$true] %s16
      %19 = dma.hbm_to_vmem [thread:$0]  %s0, 128, %s17, [#allocation3]
    $region5: #{tpu_custom_call.1} parent=1 // pred_fallthru
      _
    // Predicated region
    $region6: #{tpu_custom_call.1} parent=1 // pred_check
      _
    $region7: #{tpu_custom_call.1} parent=1 // pred_check_branch
      %21 = sbr.rel (0) target = $region9
    $region8: #{tpu_custom_call.1} parent=1 // pred_region
      %s23 = ssub.s32 6144, 6144
      %24 = vsyncadd [#allocation6], %s23
      %s25 = sshll.u32 [#allocation5], 4
      %s26 = int_to_ptr.vmem [resolvable:$true] %s25
      %31 = dma.hbm_to_vmem [thread:$0]  %s1, 6144, %s26, [#allocation6], 128, 128, 8
    $region9: #{tpu_custom_call.1} parent=1 // pred_fallthru
      _
    // Predicated region
    $region10: #{tpu_custom_call.1} parent=1 // pred_check
      _
    $region11: #{tpu_custom_call.1} parent=1 // pred_check_branch
      %33 = sbr.rel (0) target = $region13
    $region12: #{tpu_custom_call.1} parent=1 // pred_region
      %34 = dma.done [#allocation3], 128
    $region13: #{tpu_custom_call.1} parent=1 // pred_fallthru
      _
    // Predicated region
    $region14: #{tpu_custom_call.1} parent=1 // pred_check
      _
    $region15: #{tpu_custom_call.1} parent=1 // pred_check_branch
      %36 = sbr.rel (0) target = $region17
    $region16: #{tpu_custom_call.1} parent=1 // pred_region
      %37 = dma.done [#allocation6], 6144
    $region17: #{tpu_custom_call.1} parent=1 // pred_fallthru
      _
    %v38 = vld [vmem:[#allocation2] sm:$0xff]
    %v39 = vld [vmem:[#allocation5] sm:$0xff]
    %v40 = vld [vmem:[#allocation5 + $0x8] sm:$0xff]
    %v41 = vld [vmem:[#allocation5 + $0x10] sm:$0xff]
    %v42 = vld [vmem:[#allocation5 + $0x18] sm:$0xff]
    %v43 = vld [vmem:[#allocation5 + $0x20] sm:$0xff]
    %v44 = vld [vmem:[#allocation5 + $0x28] sm:$0xff]
    %v45 = vld [vmem:[#allocation5 + $0x30] sm:$0xff]
    %v46 = vld [vmem:[#allocation5 + $0x38] sm:$0xff]
    %v47 = vld [vmem:[#allocation5 + $0x40] sm:$0xff]
    %v48 = vld [vmem:[#allocation5 + $0x48] sm:$0xff]
    %v49 = vld [vmem:[#allocation5 + $0x50] sm:$0xff]
    %v50 = vld [vmem:[#allocation5 + $0x58] sm:$0xff]
    %v51 = vld [vmem:[#allocation5 + $0x60] sm:$0xff]
    %v52 = vld [vmem:[#allocation5 + $0x68] sm:$0xff]
    %v53 = vld [vmem:[#allocation5 + $0x70] sm:$0xff]
    %v54 = vld [vmem:[#allocation5 + $0x78] sm:$0xff]
    %55 = vmatprep.subr.mxu0 0.0
    %56 = vmatpush1.msra.mxu0 %v39
    %57 = vmatprep.subr.mxu0 0.0
    %58 = vmatpush1.msra.mxu0 %v40
    %59 = vmatprep.subr.mxu0 0.0
    %60 = vmatpush1.msra.mxu0 %v41
    %61 = vmatprep.subr.mxu0 0.0
    %62 = vmatpush1.msra.mxu0 %v42
    %63 = vmatprep.subr.mxu0 0.0
    %64 = vmatpush1.msra.mxu0 %v43
    %65 = vmatprep.subr.mxu0 0.0
    %66 = vmatpush1.msra.mxu0 %v44
    %67 = vmatprep.subr.mxu0 0.0
    %68 = vmatpush1.msra.mxu0 %v45
    %69 = vmatprep.subr.mxu0 0.0
    %70 = vmatpush1.msra.mxu0 %v46
    %71 = vmatprep.subr.mxu0 0.0
    %72 = vmatpush1.msra.mxu0 %v47
    %73 = vmatprep.subr.mxu0 0.0
    %74 = vmatpush1.msra.mxu0 %v48
    %75 = vmatprep.subr.mxu0 0.0
    %76 = vmatpush1.msra.mxu0 %v49
    %77 = vmatprep.subr.mxu0 0.0
    %78 = vmatpush1.msra.mxu0 %v50
    %79 = vmatprep.subr.mxu0 0.0
    %80 = vmatpush1.msra.mxu0 %v51
    %81 = vmatprep.subr.mxu0 0.0
    %82 = vmatpush1.msra.mxu0 %v52
    %83 = vmatprep.subr.mxu0 0.0
    %84 = vmatpush1.msra.mxu0 %v53
    %85 = vmatprep.subr.mxu0 0.0
    %86 = vmatpush1.msra.mxu0 %v54
    %87 = vmatprep.subr.mxu0 0.0
    %88 = vmatpush1.msra.mxu0 0.0
    %89 = vmatprep.subr.mxu0 0.0
    %90 = vmatpush1.msra.mxu0 0.0
    %91 = vmatprep.subr.mxu0 0.0
    %92 = vmatpush1.msra.mxu0 0.0
    %93 = vmatprep.subr.mxu0 0.0
    %94 = vmatpush1.msra.mxu0 0.0
    %95 = vmatprep.subr.mxu0 0.0
    %96 = vmatpush1.msra.mxu0 0.0
    %97 = vmatprep.subr.mxu0 0.0
    %98 = vmatpush1.msra.mxu0 0.0
    %99 = vmatprep.subr.mxu0 0.0
    %100 = vmatpush1.msra.mxu0 0.0
    %101 = vmatprep.subr.mxu0 0.0
    %102 = vmatpush1.msra.mxu0 0.0
    %103 = vmatprep.subr.mxu0 0.0
    %104 = vmatpush1.msra.mxu0 0.0
    %105 = vmatprep.subr.mxu0 0.0
    %106 = vmatpush1.msra.mxu0 0.0
    %107 = vmatprep.subr.mxu0 0.0
    %108 = vmatpush1.msra.mxu0 0.0
    %109 = vmatprep.subr.mxu0 0.0
    %110 = vmatpush1.msra.mxu0 0.0
    %111 = vmatprep.subr.mxu0 0.0
    %112 = vmatpush1.msra.mxu0 0.0
    %113 = vmatprep.subr.mxu0 0.0
    %114 = vmatpush1.msra.mxu0 0.0
    %115 = vmatprep.subr.mxu0 0.0
    %116 = vmatpush1.msra.mxu0 0.0
    %117 = vmatprep.subr.mxu0 0.0
    %118 = vmatpush1.msra.mxu0 0.0
    %119 = vmatprep.mubr.f32.mxu0 0.0
    %120 = vmatmul.mubr.f32.gmra.mrb[0].mxu0 %v38
    %v121 = vpop.f32.mrb[0].mxu0
    %v122 = vadd.f32 0.0, %v121
    %v123 = vpop.f32.mrb[0].mxu0
    %124 = vdwg.mxu0
    %v125 = vmax.f32 %v122, 0.0
    %s126 = scalar_lea.vmem [#allocation5], 128
    %v127 = vld [vmem:[%s126] sm:$0xff]
    %v128 = vld [vmem:[%s126 + $0x8] sm:$0xff]
    %v129 = vld [vmem:[%s126 + $0x10] sm:$0xff]
    %v130 = vld [vmem:[%s126 + $0x18] sm:$0xff]
    %v131 = vld [vmem:[%s126 + $0x20] sm:$0xff]
    %v132 = vld [vmem:[%s126 + $0x28] sm:$0xff]
    %v133 = vld [vmem:[%s126 + $0x30] sm:$0xff]
    %v134 = vld [vmem:[%s126 + $0x38] sm:$0xff]
    %v135 = vld [vmem:[%s126 + $0x40] sm:$0xff]
    %v136 = vld [vmem:[%s126 + $0x48] sm:$0xff]
    %v137 = vld [vmem:[%s126 + $0x50] sm:$0xff]
    %v138 = vld [vmem:[%s126 + $0x58] sm:$0xff]
    %v139 = vld [vmem:[%s126 + $0x60] sm:$0xff]
    %v140 = vld [vmem:[%s126 + $0x68] sm:$0xff]
    %v141 = vld [vmem:[%s126 + $0x70] sm:$0xff]
    %v142 = vld [vmem:[%s126 + $0x78] sm:$0xff]
    %143 = vmatprep.subr.mxu0 0.0
    %144 = vmatpush1.msra.mxu0 %v127
    %145 = vmatprep.subr.mxu0 0.0
    %146 = vmatpush1.msra.mxu0 %v128
    %147 = vmatprep.subr.mxu0 0.0
    %148 = vmatpush1.msra.mxu0 %v129
    %149 = vmatprep.subr.mxu0 0.0
    %150 = vmatpush1.msra.mxu0 %v130
    %151 = vmatprep.subr.mxu0 0.0
    %152 = vmatpush1.msra.mxu0 %v131
    %153 = vmatprep.subr.mxu0 0.0
    %154 = vmatpush1.msra.mxu0 %v132
    %155 = vmatprep.subr.mxu0 0.0
    %156 = vmatpush1.msra.mxu0 %v133
    %157 = vmatprep.subr.mxu0 0.0
    %158 = vmatpush1.msra.mxu0 %v134
    %159 = vmatprep.subr.mxu0 0.0
    %160 = vmatpush1.msra.mxu0 %v135
    %161 = vmatprep.subr.mxu0 0.0
    %162 = vmatpush1.msra.mxu0 %v136
    %163 = vmatprep.subr.mxu0 0.0
    %164 = vmatpush1.msra.mxu0 %v137
    %165 = vmatprep.subr.mxu0 0.0
    %166 = vmatpush1.msra.mxu0 %v138
    %167 = vmatprep.subr.mxu0 0.0
    %168 = vmatpush1.msra.mxu0 %v139
    %169 = vmatprep.subr.mxu0 0.0
    %170 = vmatpush1.msra.mxu0 %v140
    %171 = vmatprep.subr.mxu0 0.0
    %172 = vmatpush1.msra.mxu0 %v141
    %173 = vmatprep.subr.mxu0 0.0
    %174 = vmatpush1.msra.mxu0 %v142
    %175 = vmatprep.subr.mxu0 0.0
    %176 = vmatpush1.msra.mxu0 0.0
    %177 = vmatprep.subr.mxu0 0.0
    %178 = vmatpush1.msra.mxu0 0.0
    %179 = vmatprep.subr.mxu0 0.0
    %180 = vmatpush1.msra.mxu0 0.0
    %181 = vmatprep.subr.mxu0 0.0
    %182 = vmatpush1.msra.mxu0 0.0
    %183 = vmatprep.subr.mxu0 0.0
    %184 = vmatpush1.msra.mxu0 0.0
    %185 = vmatprep.subr.mxu0 0.0
    %186 = vmatpush1.msra.mxu0 0.0
    %187 = vmatprep.subr.mxu0 0.0
    %188 = vmatpush1.msra.mxu0 0.0
    %189 = vmatprep.subr.mxu0 0.0
    %190 = vmatpush1.msra.mxu0 0.0
    %191 = vmatprep.subr.mxu0 0.0
    %192 = vmatpush1.msra.mxu0 0.0
    %193 = vmatprep.subr.mxu0 0.0
    %194 = vmatpush1.msra.mxu0 0.0
    %195 = vmatprep.subr.mxu0 0.0
    %196 = vmatpush1.msra.mxu0 0.0
    %197 = vmatprep.subr.mxu0 0.0
    %198 = vmatpush1.msra.mxu0 0.0
    %199 = vmatprep.subr.mxu0 0.0
    %200 = vmatpush1.msra.mxu0 0.0
    %201 = vmatprep.subr.mxu0 0.0
    %202 = vmatpush1.msra.mxu0 0.0
    %203 = vmatprep.subr.mxu0 0.0
    %204 = vmatpush1.msra.mxu0 0.0
    %205 = vmatprep.subr.mxu0 0.0
    %206 = vmatpush1.msra.mxu0 0.0
    %207 = vmatprep.mubr.f32.mxu0 0.0
    %208 = vmatmul.mubr.f32.gmra.mrb[0].mxu0 %v125
    %v209 = vpop.f32.mrb[0].mxu0
    %v210 = vadd.f32 0.0, %v209
    %v211 = vpop.f32.mrb[0].mxu0
    %212 = vdwg.mxu0
    %v213 = vmax.f32 %v210, 0.0
    %s214 = scalar_lea.vmem [#allocation5], 256
    %v215 = vld [vmem:[%s214] sm:$0xff]
    %v216 = vld [vmem:[%s214 + $0x8] sm:$0xff]
    %v217 = vld [vmem:[%s214 + $0x10] sm:$0xff]
    %v218 = vld [vmem:[%s214 + $0x18] sm:$0xff]
    %v219 = vld [vmem:[%s214 + $0x20] sm:$0xff]
    %v220 = vld [vmem:[%s214 + $0x28] sm:$0xff]
    %v221 = vld [vmem:[%s214 + $0x30] sm:$0xff]
    %v222 = vld [vmem:[%s214 + $0x38] sm:$0xff]
    %v223 = vld [vmem:[%s214 + $0x40] sm:$0xff]
    %v224 = vld [vmem:[%s214 + $0x48] sm:$0xff]
    %v225 = vld [vmem:[%s214 + $0x50] sm:$0xff]
    %v226 = vld [vmem:[%s214 + $0x58] sm:$0xff]
    %v227 = vld [vmem:[%s214 + $0x60] sm:$0xff]
    %v228 = vld [vmem:[%s214 + $0x68] sm:$0xff]
    %v229 = vld [vmem:[%s214 + $0x70] sm:$0xff]
    %v230 = vld [vmem:[%s214 + $0x78] sm:$0xff]
    %231 = vmatprep.subr.mxu0 0.0
    %232 = vmatpush1.msra.mxu0 %v215
    %233 = vmatprep.subr.mxu0 0.0
    %234 = vmatpush1.msra.mxu0 %v216
    %235 = vmatprep.subr.mxu0 0.0
    %236 = vmatpush1.msra.mxu0 %v217
    %237 = vmatprep.subr.mxu0 0.0
    %238 = vmatpush1.msra.mxu0 %v218
    %239 = vmatprep.subr.mxu0 0.0
    %240 = vmatpush1.msra.mxu0 %v219
    %241 = vmatprep.subr.mxu0 0.0
    %242 = vmatpush1.msra.mxu0 %v220
    %243 = vmatprep.subr.mxu0 0.0
    %244 = vmatpush1.msra.mxu0 %v221
    %245 = vmatprep.subr.mxu0 0.0
    %246 = vmatpush1.msra.mxu0 %v222
    %247 = vmatprep.subr.mxu0 0.0
    %248 = vmatpush1.msra.mxu0 %v223
    %249 = vmatprep.subr.mxu0 0.0
    %250 = vmatpush1.msra.mxu0 %v224
    %251 = vmatprep.subr.mxu0 0.0
    %252 = vmatpush1.msra.mxu0 %v225
    %253 = vmatprep.subr.mxu0 0.0
    %254 = vmatpush1.msra.mxu0 %v226
    %255 = vmatprep.subr.mxu0 0.0
    %256 = vmatpush1.msra.mxu0 %v227
    %257 = vmatprep.subr.mxu0 0.0
    %258 = vmatpush1.msra.mxu0 %v228
    %259 = vmatprep.subr.mxu0 0.0
    %260 = vmatpush1.msra.mxu0 %v229
    %261 = vmatprep.subr.mxu0 0.0
    %262 = vmatpush1.msra.mxu0 %v230
    %263 = vmatprep.subr.mxu0 0.0
    %264 = vmatpush1.msra.mxu0 0.0
    %265 = vmatprep.subr.mxu0 0.0
    %266 = vmatpush1.msra.mxu0 0.0
    %267 = vmatprep.subr.mxu0 0.0
    %268 = vmatpush1.msra.mxu0 0.0
    %269 = vmatprep.subr.mxu0 0.0
    %270 = vmatpush1.msra.mxu0 0.0
    %271 = vmatprep.subr.mxu0 0.0
    %272 = vmatpush1.msra.mxu0 0.0
    %273 = vmatprep.subr.mxu0 0.0
    %274 = vmatpush1.msra.mxu0 0.0
    %275 = vmatprep.subr.mxu0 0.0
    %276 = vmatpush1.msra.mxu0 0.0
    %277 = vmatprep.subr.mxu0 0.0
    %278 = vmatpush1.msra.mxu0 0.0
    %279 = vmatprep.subr.mxu0 0.0
    %280 = vmatpush1.msra.mxu0 0.0
    %281 = vmatprep.subr.mxu0 0.0
    %282 = vmatpush1.msra.mxu0 0.0
    %283 = vmatprep.subr.mxu0 0.0
    %284 = vmatpush1.msra.mxu0 0.0
    %285 = vmatprep.subr.mxu0 0.0
    %286 = vmatpush1.msra.mxu0 0.0
    %287 = vmatprep.subr.mxu0 0.0
    %288 = vmatpush1.msra.mxu0 0.0
    %289 = vmatprep.subr.mxu0 0.0
    %290 = vmatpush1.msra.mxu0 0.0
    %291 = vmatprep.subr.mxu0 0.0
    %292 = vmatpush1.msra.mxu0 0.0
    %293 = vmatprep.subr.mxu0 0.0
    %294 = vmatpush1.msra.mxu0 0.0
    %295 = vmatprep.mubr.f32.mxu0 0.0
    %296 = vmatmul.mubr.f32.gmra.mrb[0].mxu0 %v213
    %v297 = vpop.f32.mrb[0].mxu0
    %v298 = vadd.f32 0.0, %v297
    %v299 = vpop.f32.mrb[0].mxu0
    %300 = vdwg.mxu0
    %301 = vst [vmem:[#allocation7] sm:$0xff] %v298
    // Predicated region
    $region18: #{tpu_custom_call.1} parent=1 // pred_check
      _
    $region19: #{tpu_custom_call.1} parent=1 // pred_check_branch
      %303 = sbr.rel (0) target = $region21
    $region20: #{tpu_custom_call.1} parent=1 // pred_region
      %s305 = ssub.s32 128, 128
      %306 = vsyncadd [#allocation4], %s305
      %s308 = sshll.u32 [#allocation7], 4
      %s309 = int_to_ptr.vmem [resolvable:$true] %s308
      %311 = dma.vmem_to_hbm [thread:$0]  %s309, 128, %s2, [#allocation4]
    $region21: #{tpu_custom_call.1} parent=1 // pred_fallthru
      _
    // Predicated region
    $region22: #{tpu_custom_call.1} parent=1 // pred_check
      _
    $region23: #{tpu_custom_call.1} parent=1 // pred_check_branch
      %313 = sbr.rel (0) target = $region25
    $region24: #{tpu_custom_call.1} parent=1 // pred_region
      %314 = dma.done [#allocation4], 128
    $region25: #{tpu_custom_call.1} parent=1 // pred_fallthru
      _
    %315 = vsyncpa [#allocation3], 1
    %316 = vsyncpa [#allocation6], 1
    %317 = vsyncpa [#allocation4], 1

</llo_original>
